<compile_context>
chip_gen: v7x
topology: tpu7x:2x2x1
jax: 0.10.0
libtpu: 0.0.40
codegen_flags: <defaults>
</compile_context>

<pallas_src>
import jax
import jax.numpy as jnp
from jax import lax
from jax.experimental import pallas as pl
from jax.experimental.pallas import tpu as pltpu

# Model hyper-parameters (small, consistent with the module's __init__).
N_MAX = 8                      # N_max
E_CH = 10                      # edge_embedding_channels
IN_CH = 2                      # in_channels
HIDDEN = N_MAX * E_CH          # hidden_channels == out_channels == 80
BATCH = 2

# Packed-slab row offsets (sublane-aligned starts for the big pieces).
_W1_R0 = 0
_B1_R0 = 2
_W2_R0 = 8
_B2_R0 = 88
_P12_ROWS = 96                          # padded to a multiple of 8 sublanes
_P3_ROWS = N_MAX * HIDDEN + N_MAX       # 648 (multiple of 8)


def adjacency_fused_kernel(x_ref, p12_ref, p3_ref, c_ref, xe_scr):
    """Fused forward: MLP -> (layer-3 fused unflatten) -> Gram -> sigmoid -> diag:=1."""
    batch = x_ref.shape[0]
    n_max = c_ref.shape[1]
    e_ch = xe_scr.shape[1]
    hidden = p12_ref.shape[1]

    # ---- Layers 1 & 2: MXU matmuls (whole problem resident in VMEM).
    w1 = p12_ref[_W1_R0:_W1_R0 + IN_CH, :]          # (2, 80)
    b1 = p12_ref[_B1_R0:_B1_R0 + 1, :]              # (1, 80)
    w2 = p12_ref[_W2_R0:_W2_R0 + hidden, :]         # (80, 80)
    b2 = p12_ref[_B2_R0:_B2_R0 + 1, :]              # (1, 80)
    h = jnp.dot(x_ref[...], w1, preferred_element_type=jnp.float32) + b1
    h = jnp.maximum(h, 0.0)
    h = jnp.dot(h, w2, preferred_element_type=jnp.float32) + b2
    h = jnp.maximum(h, 0.0)                                          # (B, 80)

    # ---- Layer 3 fused with the unflatten (B, N*E) -> (B*N, E):
    # one tiny (B,80)@(80,10) MXU dot per node; its rows are stored at
    # sublane offsets n and N_max+n of the scratch (lane offset 0, no lane
    # rotates, no lane-unaligned copies).
    for n in range(n_max):                                           # static unroll
        w3n = p3_ref[n * hidden:(n + 1) * hidden, :]                 # (80, 10)
        b3n = p3_ref[n_max * hidden + n:n_max * hidden + n + 1, :]   # (1, 10)
        t = jnp.dot(h, w3n, preferred_element_type=jnp.float32) + b3n  # (B, 10)
        for b in range(batch):                                       # static unroll
            xe_scr[b * n_max + n:b * n_max + n + 1, :] = t[b:b + 1, :]

    # ---- Per-batch Gram + sigmoid + forced diagonal; single 2-D output tile,
    # written with aligned sublane-offset stores.
    rows = lax.broadcasted_iota(jnp.int32, (n_max, n_max), 0)
    cols = lax.broadcasted_iota(jnp.int32, (n_max, n_max), 1)
    eye = (rows == cols).astype(jnp.float32)                         # (N, N)
    not_eye = 1.0 - eye

    for b in range(batch):                                           # static unroll
        xe_b = xe_scr[b * n_max:(b + 1) * n_max, :]                  # (N, E)
        # G = xe_b @ xe_b.T via rhs-transposed contraction (no XLU transpose).
        g = lax.dot_general(xe_b, xe_b, (((1,), (1,)), ((), ())),
                            preferred_element_type=jnp.float32)      # (N, N)
        # sigmoid(x) == 0.5*tanh(0.5*x) + 0.5 : one EUP push.
        c = 0.5 * jnp.tanh(0.5 * g) + 0.5
        # C * ~mask + mask  (matches the torch expression exactly).
        c_ref[b * n_max:(b + 1) * n_max, :] = c * not_eye + eye


def init_params(key):
    """Deterministic synthetic weights (shapes from adjacency_NN.__init__)."""
    k1, k2, k3, k4, k5, k6 = jax.random.split(key, 6)
    w1 = 0.1 * jax.random.normal(k1, (IN_CH, HIDDEN), jnp.float32)
    b1 = 0.1 * jax.random.normal(k2, (1, HIDDEN), jnp.float32)
    w2 = 0.1 * jax.random.normal(k3, (HIDDEN, HIDDEN), jnp.float32)
    b2 = 0.1 * jax.random.normal(k4, (1, HIDDEN), jnp.float32)
    w3 = 0.1 * jax.random.normal(k5, (HIDDEN, HIDDEN), jnp.float32)
    b3 = 0.1 * jax.random.normal(k6, (1, HIDDEN), jnp.float32)
    return (w1, b1, w2, b2, w3, b3)


def pack_params(params):
    """Host-side one-time packing of the six weight arrays into two slabs."""
    w1, b1, w2, b2, w3, b3 = params
    hidden = w2.shape[0]
    p12 = jnp.zeros((_P12_ROWS, hidden), jnp.float32)
    p12 = p12.at[_W1_R0:_W1_R0 + w1.shape[0]].set(w1)
    p12 = p12.at[_B1_R0:_B1_R0 + 1].set(b1)
    p12 = p12.at[_W2_R0:_W2_R0 + hidden].set(w2)
    p12 = p12.at[_B2_R0:_B2_R0 + 1].set(b2)
    # W3 laid out per output node: rows [n*H:(n+1)*H] = W3[:, n*E:(n+1)*E].
    w3r = w3.reshape(hidden, N_MAX, E_CH).transpose(1, 0, 2).reshape(N_MAX * hidden, E_CH)
    b3r = b3.reshape(N_MAX, E_CH)
    p3 = jnp.concatenate([w3r, b3r], axis=0)                         # (648, 10)
    return p12, p3


def adjacency_nn_forward(x, packed_params):
    p12, p3 = packed_params
    batch = x.shape[0]
    vmem = pl.BlockSpec(memory_space=pltpu.MemorySpace.VMEM)

    # Single fused kernel: no grid, everything (~80 KB) resident in VMEM.
    out2d = pl.pallas_call(
        adjacency_fused_kernel,
        out_shape=jax.ShapeDtypeStruct((batch * N_MAX, N_MAX), jnp.float32),
        in_specs=[vmem, vmem, vmem],
        out_specs=vmem,
        scratch_shapes=[
            pltpu.VMEM((batch * N_MAX, E_CH), jnp.float32),   # unflattened xe
        ],
    )(x, p12, p3)
    # Free metadata reshape back to (B, N, N).
    return out2d.reshape(batch, N_MAX, N_MAX)


def reference_forward(x, params):
    """Pure-JAX reference for a sanity check."""
    w1, b1, w2, b2, w3, b3 = params
    h = jnp.maximum(x @ w1 + b1, 0.0)
    h = jnp.maximum(h @ w2 + b2, 0.0)
    y = h @ w3 + b3
    xe = y.reshape(x.shape[0], N_MAX, E_CH)
    dot = jnp.einsum("ikd,ild->ikl", xe, xe)
    c = jax.nn.sigmoid(dot)
    eye = jnp.eye(N_MAX, dtype=jnp.float32)[None]
    return c * (1.0 - eye) + eye


if __name__ == "__main__":
    key = jax.random.PRNGKey(0)
    k_x, k_p = jax.random.split(key)
    x = jax.random.normal(k_x, (BATCH, IN_CH), jnp.float32)
    params = init_params(k_p)
    packed = pack_params(params)

    out = adjacency_nn_forward(x, packed)
    out = jax.block_until_ready(out)

    ref = reference_forward(x, params)
    assert out.shape == (BATCH, N_MAX, N_MAX)
    assert jnp.allclose(out, ref, atol=1e-5, rtol=1e-5)
    # Diagonal must be exactly 1.
    assert jnp.allclose(jnp.diagonal(out, axis1=1, axis2=2), 1.0)

    print("KERNEL_OK")
</pallas_src>

<mosaic_0001>
module attributes {stable_mosaic.version = 11 : i64} {
  func.func @adjacency_fused_kernel(%arg0: memref<2x2xf32, #tpu.memory_space<vmem>>, %arg1: memref<96x80xf32, #tpu.memory_space<vmem>>, %arg2: memref<648x10xf32, #tpu.memory_space<vmem>>, %arg3: memref<16x8xf32, #tpu.memory_space<vmem>>, %arg4: memref<16x10xf32, #tpu.memory_space<vmem>>) attributes {dimension_semantics = [], scalar_prefetch = 0 : i64, scratch_operands = 1 : i64, tpu.core_type = #tpu.core_type<tc>} {
    %c0 = arith.constant 0 : index
    %c0_0 = arith.constant 0 : index
    %0 = vector.load %arg1[%c0, %c0_0] : memref<96x80xf32, #tpu.memory_space<vmem>>, vector<2x80xf32>
    %c2 = arith.constant 2 : index
    %c0_1 = arith.constant 0 : index
    %1 = vector.load %arg1[%c2, %c0_1] : memref<96x80xf32, #tpu.memory_space<vmem>>, vector<1x80xf32>
    %c8 = arith.constant 8 : index
    %c0_2 = arith.constant 0 : index
    %2 = vector.load %arg1[%c8, %c0_2] : memref<96x80xf32, #tpu.memory_space<vmem>>, vector<80x80xf32>
    %c88 = arith.constant 88 : index
    %c0_3 = arith.constant 0 : index
    %3 = vector.load %arg1[%c88, %c0_3] : memref<96x80xf32, #tpu.memory_space<vmem>>, vector<1x80xf32>
    %c0_4 = arith.constant 0 : index
    %c0_5 = arith.constant 0 : index
    %4 = vector.load %arg0[%c0_4, %c0_5] : memref<2x2xf32, #tpu.memory_space<vmem>>, vector<2x2xf32>
    %cst = arith.constant dense<0.000000e+00> : vector<2x80xf32>
    %5 = tpu.matmul %4, %0, %cst {dimension_numbers = #tpu.dot_dimension_numbers<[1], [0], [0], [1], [0, 0, 1, 1], [], []>} : vector<2x2xf32>, vector<2x80xf32>, vector<2x80xf32> -> vector<2x80xf32>
    %6 = vector.broadcast %1 : vector<1x80xf32> to vector<2x80xf32>
    %7 = arith.addf %5, %6 : vector<2x80xf32>
    %cst_6 = arith.constant 0.000000e+00 : f32
    %8 = vector.broadcast %cst_6 : f32 to vector<2x80xf32>
    %9 = arith.maximumf %7, %8 : vector<2x80xf32>
    %cst_7 = arith.constant dense<0.000000e+00> : vector<2x80xf32>
    %10 = tpu.matmul %9, %2, %cst_7 {dimension_numbers = #tpu.dot_dimension_numbers<[1], [0], [0], [1], [0, 0, 1, 1], [], []>} : vector<2x80xf32>, vector<80x80xf32>, vector<2x80xf32> -> vector<2x80xf32>
    %11 = vector.broadcast %3 : vector<1x80xf32> to vector<2x80xf32>
    %12 = arith.addf %10, %11 : vector<2x80xf32>
    %cst_8 = arith.constant 0.000000e+00 : f32
    %13 = vector.broadcast %cst_8 : f32 to vector<2x80xf32>
    %14 = arith.maximumf %12, %13 : vector<2x80xf32>
    %c0_9 = arith.constant 0 : index
    %c0_10 = arith.constant 0 : index
    %15 = vector.load %arg2[%c0_9, %c0_10] : memref<648x10xf32, #tpu.memory_space<vmem>>, vector<80x10xf32>
    %c640 = arith.constant 640 : index
    %c0_11 = arith.constant 0 : index
    %16 = vector.load %arg2[%c640, %c0_11] : memref<648x10xf32, #tpu.memory_space<vmem>>, vector<1x10xf32>
    %cst_12 = arith.constant dense<0.000000e+00> : vector<2x10xf32>
    %17 = tpu.matmul %14, %15, %cst_12 {dimension_numbers = #tpu.dot_dimension_numbers<[1], [0], [0], [1], [0, 0, 1, 1], [], []>} : vector<2x80xf32>, vector<80x10xf32>, vector<2x10xf32> -> vector<2x10xf32>
    %18 = vector.broadcast %16 : vector<1x10xf32> to vector<2x10xf32>
    %19 = arith.addf %17, %18 : vector<2x10xf32>
    %20 = vector.extract_strided_slice %19 {offsets = [0, 0], sizes = [1, 10], strides = [1, 1]} : vector<2x10xf32> to vector<1x10xf32>
    %c0_13 = arith.constant 0 : index
    %c0_14 = arith.constant 0 : index
    %21 = vector.load %arg4[%c0_13, %c0_14] : memref<16x10xf32, #tpu.memory_space<vmem>>, vector<1x10xf32>
    tpu.vector_store %arg4[%c0_13, %c0_14], %20 {strides = array<i32>} : memref<16x10xf32, #tpu.memory_space<vmem>>, vector<1x10xf32>,
    %22 = vector.extract_strided_slice %19 {offsets = [1, 0], sizes = [1, 10], strides = [1, 1]} : vector<2x10xf32> to vector<1x10xf32>
    %c8_15 = arith.constant 8 : index
    %c0_16 = arith.constant 0 : index
    %23 = vector.load %arg4[%c8_15, %c0_16] : memref<16x10xf32, #tpu.memory_space<vmem>>, vector<1x10xf32>
    tpu.vector_store %arg4[%c8_15, %c0_16], %22 {strides = array<i32>} : memref<16x10xf32, #tpu.memory_space<vmem>>, vector<1x10xf32>,
    %c80 = arith.constant 80 : index
    %c0_17 = arith.constant 0 : index
    %24 = vector.load %arg2[%c80, %c0_17] : memref<648x10xf32, #tpu.memory_space<vmem>>, vector<80x10xf32>
    %c641 = arith.constant 641 : index
    %c0_18 = arith.constant 0 : index
    %25 = vector.load %arg2[%c641, %c0_18] : memref<648x10xf32, #tpu.memory_space<vmem>>, vector<1x10xf32>
    %cst_19 = arith.constant dense<0.000000e+00> : vector<2x10xf32>
    %26 = tpu.matmul %14, %24, %cst_19 {dimension_numbers = #tpu.dot_dimension_numbers<[1], [0], [0], [1], [0, 0, 1, 1], [], []>} : vector<2x80xf32>, vector<80x10xf32>, vector<2x10xf32> -> vector<2x10xf32>
    %27 = vector.broadcast %25 : vector<1x10xf32> to vector<2x10xf32>
    %28 = arith.addf %26, %27 : vector<2x10xf32>
    %29 = vector.extract_strided_slice %28 {offsets = [0, 0], sizes = [1, 10], strides = [1, 1]} : vector<2x10xf32> to vector<1x10xf32>
    %c1 = arith.constant 1 : index
    %c0_20 = arith.constant 0 : index
    %30 = vector.load %arg4[%c1, %c0_20] : memref<16x10xf32, #tpu.memory_space<vmem>>, vector<1x10xf32>
    tpu.vector_store %arg4[%c1, %c0_20], %29 {strides = array<i32>} : memref<16x10xf32, #tpu.memory_space<vmem>>, vector<1x10xf32>,
    %31 = vector.extract_strided_slice %28 {offsets = [1, 0], sizes = [1, 10], strides = [1, 1]} : vector<2x10xf32> to vector<1x10xf32>
    %c9 = arith.constant 9 : index
    %c0_21 = arith.constant 0 : index
    %32 = vector.load %arg4[%c9, %c0_21] : memref<16x10xf32, #tpu.memory_space<vmem>>, vector<1x10xf32>
    tpu.vector_store %arg4[%c9, %c0_21], %31 {strides = array<i32>} : memref<16x10xf32, #tpu.memory_space<vmem>>, vector<1x10xf32>,
    %c160 = arith.constant 160 : index
    %c0_22 = arith.constant 0 : index
    %33 = vector.load %arg2[%c160, %c0_22] : memref<648x10xf32, #tpu.memory_space<vmem>>, vector<80x10xf32>
    %c642 = arith.constant 642 : index
    %c0_23 = arith.constant 0 : index
    %34 = vector.load %arg2[%c642, %c0_23] : memref<648x10xf32, #tpu.memory_space<vmem>>, vector<1x10xf32>
    %cst_24 = arith.constant dense<0.000000e+00> : vector<2x10xf32>
    %35 = tpu.matmul %14, %33, %cst_24 {dimension_numbers = #tpu.dot_dimension_numbers<[1], [0], [0], [1], [0, 0, 1, 1], [], []>} : vector<2x80xf32>, vector<80x10xf32>, vector<2x10xf32> -> vector<2x10xf32>
    %36 = vector.broadcast %34 : vector<1x10xf32> to vector<2x10xf32>
    %37 = arith.addf %35, %36 : vector<2x10xf32>
    %38 = vector.extract_strided_slice %37 {offsets = [0, 0], sizes = [1, 10], strides = [1, 1]} : vector<2x10xf32> to vector<1x10xf32>
    %c2_25 = arith.constant 2 : index
    %c0_26 = arith.constant 0 : index
    %39 = vector.load %arg4[%c2_25, %c0_26] : memref<16x10xf32, #tpu.memory_space<vmem>>, vector<1x10xf32>
    tpu.vector_store %arg4[%c2_25, %c0_26], %38 {strides = array<i32>} : memref<16x10xf32, #tpu.memory_space<vmem>>, vector<1x10xf32>,
    %40 = vector.extract_strided_slice %37 {offsets = [1, 0], sizes = [1, 10], strides = [1, 1]} : vector<2x10xf32> to vector<1x10xf32>
    %c10 = arith.constant 10 : index
    %c0_27 = arith.constant 0 : index
    %41 = vector.load %arg4[%c10, %c0_27] : memref<16x10xf32, #tpu.memory_space<vmem>>, vector<1x10xf32>
    tpu.vector_store %arg4[%c10, %c0_27], %40 {strides = array<i32>} : memref<16x10xf32, #tpu.memory_space<vmem>>, vector<1x10xf32>,
    %c240 = arith.constant 240 : index
    %c0_28 = arith.constant 0 : index
    %42 = vector.load %arg2[%c240, %c0_28] : memref<648x10xf32, #tpu.memory_space<vmem>>, vector<80x10xf32>
    %c643 = arith.constant 643 : index
    %c0_29 = arith.constant 0 : index
    %43 = vector.load %arg2[%c643, %c0_29] : memref<648x10xf32, #tpu.memory_space<vmem>>, vector<1x10xf32>
    %cst_30 = arith.constant dense<0.000000e+00> : vector<2x10xf32>
    %44 = tpu.matmul %14, %42, %cst_30 {dimension_numbers = #tpu.dot_dimension_numbers<[1], [0], [0], [1], [0, 0, 1, 1], [], []>} : vector<2x80xf32>, vector<80x10xf32>, vector<2x10xf32> -> vector<2x10xf32>
    %45 = vector.broadcast %43 : vector<1x10xf32> to vector<2x10xf32>
    %46 = arith.addf %44, %45 : vector<2x10xf32>
    %47 = vector.extract_strided_slice %46 {offsets = [0, 0], sizes = [1, 10], strides = [1, 1]} : vector<2x10xf32> to vector<1x10xf32>
    %c3 = arith.constant 3 : index
    %c0_31 = arith.constant 0 : index
    %48 = vector.load %arg4[%c3, %c0_31] : memref<16x10xf32, #tpu.memory_space<vmem>>, vector<1x10xf32>
    tpu.vector_store %arg4[%c3, %c0_31], %47 {strides = array<i32>} : memref<16x10xf32, #tpu.memory_space<vmem>>, vector<1x10xf32>,
    %49 = vector.extract_strided_slice %46 {offsets = [1, 0], sizes = [1, 10], strides = [1, 1]} : vector<2x10xf32> to vector<1x10xf32>
    %c11 = arith.constant 11 : index
    %c0_32 = arith.constant 0 : index
    %50 = vector.load %arg4[%c11, %c0_32] : memref<16x10xf32, #tpu.memory_space<vmem>>, vector<1x10xf32>
    tpu.vector_store %arg4[%c11, %c0_32], %49 {strides = array<i32>} : memref<16x10xf32, #tpu.memory_space<vmem>>, vector<1x10xf32>,
    %c320 = arith.constant 320 : index
    %c0_33 = arith.constant 0 : index
    %51 = vector.load %arg2[%c320, %c0_33] : memref<648x10xf32, #tpu.memory_space<vmem>>, vector<80x10xf32>
    %c644 = arith.constant 644 : index
    %c0_34 = arith.constant 0 : index
    %52 = vector.load %arg2[%c644, %c0_34] : memref<648x10xf32, #tpu.memory_space<vmem>>, vector<1x10xf32>
    %cst_35 = arith.constant dense<0.000000e+00> : vector<2x10xf32>
    %53 = tpu.matmul %14, %51, %cst_35 {dimension_numbers = #tpu.dot_dimension_numbers<[1], [0], [0], [1], [0, 0, 1, 1], [], []>} : vector<2x80xf32>, vector<80x10xf32>, vector<2x10xf32> -> vector<2x10xf32>
    %54 = vector.broadcast %52 : vector<1x10xf32> to vector<2x10xf32>
    %55 = arith.addf %53, %54 : vector<2x10xf32>
    %56 = vector.extract_strided_slice %55 {offsets = [0, 0], sizes = [1, 10], strides = [1, 1]} : vector<2x10xf32> to vector<1x10xf32>
    %c4 = arith.constant 4 : index
    %c0_36 = arith.constant 0 : index
    %57 = vector.load %arg4[%c4, %c0_36] : memref<16x10xf32, #tpu.memory_space<vmem>>, vector<1x10xf32>
    tpu.vector_store %arg4[%c4, %c0_36], %56 {strides = array<i32>} : memref<16x10xf32, #tpu.memory_space<vmem>>, vector<1x10xf32>,
    %58 = vector.extract_strided_slice %55 {offsets = [1, 0], sizes = [1, 10], strides = [1, 1]} : vector<2x10xf32> to vector<1x10xf32>
    %c12 = arith.constant 12 : index
    %c0_37 = arith.constant 0 : index
    %59 = vector.load %arg4[%c12, %c0_37] : memref<16x10xf32, #tpu.memory_space<vmem>>, vector<1x10xf32>
    tpu.vector_store %arg4[%c12, %c0_37], %58 {strides = array<i32>} : memref<16x10xf32, #tpu.memory_space<vmem>>, vector<1x10xf32>,
    %c400 = arith.constant 400 : index
    %c0_38 = arith.constant 0 : index
    %60 = vector.load %arg2[%c400, %c0_38] : memref<648x10xf32, #tpu.memory_space<vmem>>, vector<80x10xf32>
    %c645 = arith.constant 645 : index
    %c0_39 = arith.constant 0 : index
    %61 = vector.load %arg2[%c645, %c0_39] : memref<648x10xf32, #tpu.memory_space<vmem>>, vector<1x10xf32>
    %cst_40 = arith.constant dense<0.000000e+00> : vector<2x10xf32>
    %62 = tpu.matmul %14, %60, %cst_40 {dimension_numbers = #tpu.dot_dimension_numbers<[1], [0], [0], [1], [0, 0, 1, 1], [], []>} : vector<2x80xf32>, vector<80x10xf32>, vector<2x10xf32> -> vector<2x10xf32>
    %63 = vector.broadcast %61 : vector<1x10xf32> to vector<2x10xf32>
    %64 = arith.addf %62, %63 : vector<2x10xf32>
    %65 = vector.extract_strided_slice %64 {offsets = [0, 0], sizes = [1, 10], strides = [1, 1]} : vector<2x10xf32> to vector<1x10xf32>
    %c5 = arith.constant 5 : index
    %c0_41 = arith.constant 0 : index
    %66 = vector.load %arg4[%c5, %c0_41] : memref<16x10xf32, #tpu.memory_space<vmem>>, vector<1x10xf32>
    tpu.vector_store %arg4[%c5, %c0_41], %65 {strides = array<i32>} : memref<16x10xf32, #tpu.memory_space<vmem>>, vector<1x10xf32>,
    %67 = vector.extract_strided_slice %64 {offsets = [1, 0], sizes = [1, 10], strides = [1, 1]} : vector<2x10xf32> to vector<1x10xf32>
    %c13 = arith.constant 13 : index
    %c0_42 = arith.constant 0 : index
    %68 = vector.load %arg4[%c13, %c0_42] : memref<16x10xf32, #tpu.memory_space<vmem>>, vector<1x10xf32>
    tpu.vector_store %arg4[%c13, %c0_42], %67 {strides = array<i32>} : memref<16x10xf32, #tpu.memory_space<vmem>>, vector<1x10xf32>,
    %c480 = arith.constant 480 : index
    %c0_43 = arith.constant 0 : index
    %69 = vector.load %arg2[%c480, %c0_43] : memref<648x10xf32, #tpu.memory_space<vmem>>, vector<80x10xf32>
    %c646 = arith.constant 646 : index
    %c0_44 = arith.constant 0 : index
    %70 = vector.load %arg2[%c646, %c0_44] : memref<648x10xf32, #tpu.memory_space<vmem>>, vector<1x10xf32>
    %cst_45 = arith.constant dense<0.000000e+00> : vector<2x10xf32>
    %71 = tpu.matmul %14, %69, %cst_45 {dimension_numbers = #tpu.dot_dimension_numbers<[1], [0], [0], [1], [0, 0, 1, 1], [], []>} : vector<2x80xf32>, vector<80x10xf32>, vector<2x10xf32> -> vector<2x10xf32>
    %72 = vector.broadcast %70 : vector<1x10xf32> to vector<2x10xf32>
    %73 = arith.addf %71, %72 : vector<2x10xf32>
    %74 = vector.extract_strided_slice %73 {offsets = [0, 0], sizes = [1, 10], strides = [1, 1]} : vector<2x10xf32> to vector<1x10xf32>
    %c6 = arith.constant 6 : index
    %c0_46 = arith.constant 0 : index
    %75 = vector.load %arg4[%c6, %c0_46] : memref<16x10xf32, #tpu.memory_space<vmem>>, vector<1x10xf32>
    tpu.vector_store %arg4[%c6, %c0_46], %74 {strides = array<i32>} : memref<16x10xf32, #tpu.memory_space<vmem>>, vector<1x10xf32>,
    %76 = vector.extract_strided_slice %73 {offsets = [1, 0], sizes = [1, 10], strides = [1, 1]} : vector<2x10xf32> to vector<1x10xf32>
    %c14 = arith.constant 14 : index
    %c0_47 = arith.constant 0 : index
    %77 = vector.load %arg4[%c14, %c0_47] : memref<16x10xf32, #tpu.memory_space<vmem>>, vector<1x10xf32>
    tpu.vector_store %arg4[%c14, %c0_47], %76 {strides = array<i32>} : memref<16x10xf32, #tpu.memory_space<vmem>>, vector<1x10xf32>,
    %c560 = arith.constant 560 : index
    %c0_48 = arith.constant 0 : index
    %78 = vector.load %arg2[%c560, %c0_48] : memref<648x10xf32, #tpu.memory_space<vmem>>, vector<80x10xf32>
    %c647 = arith.constant 647 : index
    %c0_49 = arith.constant 0 : index
    %79 = vector.load %arg2[%c647, %c0_49] : memref<648x10xf32, #tpu.memory_space<vmem>>, vector<1x10xf32>
    %cst_50 = arith.constant dense<0.000000e+00> : vector<2x10xf32>
    %80 = tpu.matmul %14, %78, %cst_50 {dimension_numbers = #tpu.dot_dimension_numbers<[1], [0], [0], [1], [0, 0, 1, 1], [], []>} : vector<2x80xf32>, vector<80x10xf32>, vector<2x10xf32> -> vector<2x10xf32>
    %81 = vector.broadcast %79 : vector<1x10xf32> to vector<2x10xf32>
    %82 = arith.addf %80, %81 : vector<2x10xf32>
    %83 = vector.extract_strided_slice %82 {offsets = [0, 0], sizes = [1, 10], strides = [1, 1]} : vector<2x10xf32> to vector<1x10xf32>
    %c7 = arith.constant 7 : index
    %c0_51 = arith.constant 0 : index
    %84 = vector.load %arg4[%c7, %c0_51] : memref<16x10xf32, #tpu.memory_space<vmem>>, vector<1x10xf32>
    tpu.vector_store %arg4[%c7, %c0_51], %83 {strides = array<i32>} : memref<16x10xf32, #tpu.memory_space<vmem>>, vector<1x10xf32>,
    %85 = vector.extract_strided_slice %82 {offsets = [1, 0], sizes = [1, 10], strides = [1, 1]} : vector<2x10xf32> to vector<1x10xf32>
    %c15 = arith.constant 15 : index
    %c0_52 = arith.constant 0 : index
    %86 = vector.load %arg4[%c15, %c0_52] : memref<16x10xf32, #tpu.memory_space<vmem>>, vector<1x10xf32>
    tpu.vector_store %arg4[%c15, %c0_52], %85 {strides = array<i32>} : memref<16x10xf32, #tpu.memory_space<vmem>>, vector<1x10xf32>,
    %87 = tpu.iota {dimensions = array<i32: 0>} : vector<8x8xi32>
    %88 = tpu.iota {dimensions = array<i32: 1>} : vector<8x8xi32>
    %89 = arith.cmpi eq, %87, %88 : vector<8x8xi32>
    %90 = arith.extui %89 : vector<8x8xi1> to vector<8x8xi32>
    %91 = arith.sitofp %90 : vector<8x8xi32> to vector<8x8xf32>
    %cst_53 = arith.constant 1.000000e+00 : f32
    %92 = vector.broadcast %cst_53 : f32 to vector<8x8xf32>
    %93 = arith.subf %92, %91 : vector<8x8xf32>
    %c0_54 = arith.constant 0 : index
    %c0_55 = arith.constant 0 : index
    %94 = vector.load %arg4[%c0_54, %c0_55] : memref<16x10xf32, #tpu.memory_space<vmem>>, vector<8x10xf32>
    %cst_56 = arith.constant dense<0.000000e+00> : vector<8x8xf32>
    %95 = tpu.matmul %94, %94, %cst_56 {dimension_numbers = #tpu.dot_dimension_numbers<[1], [1], [0], [0], [0, 0, 1, 0], [], []>} : vector<8x10xf32>, vector<8x10xf32>, vector<8x8xf32> -> vector<8x8xf32>
    %cst_57 = arith.constant 5.000000e-01 : f32
    %96 = vector.broadcast %cst_57 : f32 to vector<8x8xf32>
    %97 = arith.mulf %96, %95 : vector<8x8xf32>
    %98 = math.tanh %97 : vector<8x8xf32>
    %cst_58 = arith.constant 5.000000e-01 : f32
    %99 = vector.broadcast %cst_58 : f32 to vector<8x8xf32>
    %100 = arith.mulf %99, %98 : vector<8x8xf32>
    %cst_59 = arith.constant 5.000000e-01 : f32
    %101 = vector.broadcast %cst_59 : f32 to vector<8x8xf32>
    %102 = arith.addf %100, %101 : vector<8x8xf32>
    %103 = arith.mulf %102, %93 : vector<8x8xf32>
    %104 = arith.addf %103, %91 : vector<8x8xf32>
    %c0_60 = arith.constant 0 : index
    %c0_61 = arith.constant 0 : index
    %105 = vector.load %arg3[%c0_60, %c0_61] : memref<16x8xf32, #tpu.memory_space<vmem>>, vector<8x8xf32>
    tpu.vector_store %arg3[%c0_60, %c0_61], %104 {strides = array<i32>} : memref<16x8xf32, #tpu.memory_space<vmem>>, vector<8x8xf32>,
    %c8_62 = arith.constant 8 : index
    %c0_63 = arith.constant 0 : index
    %106 = vector.load %arg4[%c8_62, %c0_63] : memref<16x10xf32, #tpu.memory_space<vmem>>, vector<8x10xf32>
    %cst_64 = arith.constant dense<0.000000e+00> : vector<8x8xf32>
    %107 = tpu.matmul %106, %106, %cst_64 {dimension_numbers = #tpu.dot_dimension_numbers<[1], [1], [0], [0], [0, 0, 1, 0], [], []>} : vector<8x10xf32>, vector<8x10xf32>, vector<8x8xf32> -> vector<8x8xf32>
    %cst_65 = arith.constant 5.000000e-01 : f32
    %108 = vector.broadcast %cst_65 : f32 to vector<8x8xf32>
    %109 = arith.mulf %108, %107 : vector<8x8xf32>
    %110 = math.tanh %109 : vector<8x8xf32>
    %cst_66 = arith.constant 5.000000e-01 : f32
    %111 = vector.broadcast %cst_66 : f32 to vector<8x8xf32>
    %112 = arith.mulf %111, %110 : vector<8x8xf32>
    %cst_67 = arith.constant 5.000000e-01 : f32
    %113 = vector.broadcast %cst_67 : f32 to vector<8x8xf32>
    %114 = arith.addf %112, %113 : vector<8x8xf32>
    %115 = arith.mulf %114, %93 : vector<8x8xf32>
    %116 = arith.addf %115, %91 : vector<8x8xf32>
    %c8_68 = arith.constant 8 : index
    %c0_69 = arith.constant 0 : index
    %117 = vector.load %arg3[%c8_68, %c0_69] : memref<16x8xf32, #tpu.memory_space<vmem>>, vector<8x8xf32>
    tpu.vector_store %arg3[%c8_68, %c0_69], %116 {strides = array<i32>} : memref<16x8xf32, #tpu.memory_space<vmem>>, vector<8x8xf32>,
    return
  }
}

</mosaic_0001>

<llo_original>
// kernel: tpu_custom_call.1
$region0: #{tpu_custom_call.1}
  #allocation0 [shape = 'u32[]', space=smem, size = 0x4, offset = 0x4, fixed_abs, tag = 'smem constant byte address 0x4 - core index']
  #allocation1 [shape = 'u32[144,128]{1,0:T(1,128)}', space=vmem, size = 0x12000, scoped, tag = 'internal scratch']
  #allocation2 [shape = 'f32[16,10]{1,0:T(8,128)}', space=vmem, size = 0x2000, scoped, tag = 'scratch operand']
  %s0 = inlined_call_operand.vmem [shape: f32[2,2], index: 0, kind: input, shape index: {}]
  %s1 = inlined_call_operand.vmem [shape: f32[96,80], index: 1, kind: input, shape index: {}]
  %s2 = inlined_call_operand.vmem [shape: f32[648,10], index: 2, kind: input, shape index: {}]
  %s3 = inlined_call_operand.vmem [shape: f32[16,8], index: 3, kind: output, shape index: {}]
  %s4 = sld [smem:[#allocation0]]
  $region22: #{tpu_custom_call.1} parent=0
    _
  %s6 = ssub.s32 1, %s4
  %s7 = scalar_select 0, %s6, %s4
  // Predicated region
  $region2: #{tpu_custom_call.1} parent=0 // pred_check
    _
  $region3: #{tpu_custom_call.1} parent=0 // pred_check_branch
    %9 = sbr.rel (0) target = $region5
  $region4: #{tpu_custom_call.1} parent=0 // pred_region
    _
  $region5: #{tpu_custom_call.1} parent=0 // pred_fallthru
    _
  // Predicated region
  $region6: #{tpu_custom_call.1} parent=0 // pred_check
    _
  $region7: #{tpu_custom_call.1} parent=0 // pred_check_branch
    %11 = sbr.rel (0) target = $region9
  $region8: #{tpu_custom_call.1} parent=0 // pred_region
    _
  $region9: #{tpu_custom_call.1} parent=0 // pred_fallthru
    _
  // Predicated region
  $region10: #{tpu_custom_call.1} parent=0 // pred_check
    _
  $region11: #{tpu_custom_call.1} parent=0 // pred_check_branch
    %13 = sbr.rel (0) target = $region13
  $region12: #{tpu_custom_call.1} parent=0 // pred_region
    _
  $region13: #{tpu_custom_call.1} parent=0 // pred_fallthru
    _
  %v14 = vld [vmem:[%s1] sm:$0x3]
  %v15 = vld [vmem:[%s1 + $0x2] sm:$0x1]
  %v16 = vld [vmem:[%s1 + $0x8] sm:$0xff]
  %v17 = vld [vmem:[%s1 + $0x10] sm:$0xff]
  %v18 = vld [vmem:[%s1 + $0x18] sm:$0xff]
  %v19 = vld [vmem:[%s1 + $0x20] sm:$0xff]
  %v20 = vld [vmem:[%s1 + $0x28] sm:$0xff]
  %v21 = vld [vmem:[%s1 + $0x30] sm:$0xff]
  %v22 = vld [vmem:[%s1 + $0x38] sm:$0xff]
  %v23 = vld [vmem:[%s1 + $0x40] sm:$0xff]
  %v24 = vld [vmem:[%s1 + $0x48] sm:$0xff]
  %v25 = vld [vmem:[%s1 + $0x50] sm:$0xff]
  %v26 = vld [vmem:[%s1 + $0x58] sm:$0x1]
  %v27 = vld [vmem:[%s0] sm:$0x3]
  %v28 = vlaneseq
  %v29 = vshrl.u32 %v28, 7
  %v30 = vsub.s32 0, %v29
  %v31 = vrot.slane %v15, %v30
  %vm32 = vcmask 15360
  %v34 = vsel %vm32, %v27, 0
  %vm36 = vcmask 1041408
  %v38 = vsel %vm36, %v14, 0
  %40 = vmatprep.subr.mxu0 0.0
  %41 = vmatpush1.msra.mxu0 %v38
  %42 = vmatprep.subr.mxu0 0.0
  %43 = vmatpush1.msra.mxu0 0.0
  %44 = vmatprep.subr.mxu0 0.0
  %45 = vmatpush1.msra.mxu0 0.0
  %46 = vmatprep.subr.mxu0 0.0
  %47 = vmatpush1.msra.mxu0 0.0
  %48 = vmatprep.subr.mxu0 0.0
  %49 = vmatpush1.msra.mxu0 0.0
  %50 = vmatprep.subr.mxu0 0.0
  %51 = vmatpush1.msra.mxu0 0.0
  %52 = vmatprep.subr.mxu0 0.0
  %53 = vmatpush1.msra.mxu0 0.0
  %54 = vmatprep.subr.mxu0 0.0
  %55 = vmatpush1.msra.mxu0 0.0
  %56 = vmatprep.subr.mxu0 0.0
  %57 = vmatpush1.msra.mxu0 0.0
  %58 = vmatprep.subr.mxu0 0.0
  %59 = vmatpush1.msra.mxu0 0.0
  %60 = vmatprep.subr.mxu0 0.0
  %61 = vmatpush1.msra.mxu0 0.0
  %62 = vmatprep.subr.mxu0 0.0
  %63 = vmatpush1.msra.mxu0 0.0
  %64 = vmatprep.subr.mxu0 0.0
  %65 = vmatpush1.msra.mxu0 0.0
  %66 = vmatprep.subr.mxu0 0.0
  %67 = vmatpush1.msra.mxu0 0.0
  %68 = vmatprep.subr.mxu0 0.0
  %69 = vmatpush1.msra.mxu0 0.0
  %70 = vmatprep.subr.mxu0 0.0
  %71 = vmatpush1.msra.mxu0 0.0
  %72 = vmatprep.subr.mxu0 0.0
  %73 = vmatpush1.msra.mxu0 0.0
  %74 = vmatprep.subr.mxu0 0.0
  %75 = vmatpush1.msra.mxu0 0.0
  %76 = vmatprep.subr.mxu0 0.0
  %77 = vmatpush1.msra.mxu0 0.0
  %78 = vmatprep.subr.mxu0 0.0
  %79 = vmatpush1.msra.mxu0 0.0
  %80 = vmatprep.subr.mxu0 0.0
  %81 = vmatpush1.msra.mxu0 0.0
  %82 = vmatprep.subr.mxu0 0.0
  %83 = vmatpush1.msra.mxu0 0.0
  %84 = vmatprep.subr.mxu0 0.0
  %85 = vmatpush1.msra.mxu0 0.0
  %86 = vmatprep.subr.mxu0 0.0
  %87 = vmatpush1.msra.mxu0 0.0
  %88 = vmatprep.subr.mxu0 0.0
  %89 = vmatpush1.msra.mxu0 0.0
  %90 = vmatprep.subr.mxu0 0.0
  %91 = vmatpush1.msra.mxu0 0.0
  %92 = vmatprep.subr.mxu0 0.0
  %93 = vmatpush1.msra.mxu0 0.0
  %94 = vmatprep.subr.mxu0 0.0
  %95 = vmatpush1.msra.mxu0 0.0
  %96 = vmatprep.subr.mxu0 0.0
  %97 = vmatpush1.msra.mxu0 0.0
  %98 = vmatprep.subr.mxu0 0.0
  %99 = vmatpush1.msra.mxu0 0.0
  %100 = vmatprep.subr.mxu0 0.0
  %101 = vmatpush1.msra.mxu0 0.0
  %102 = vmatprep.subr.mxu0 0.0
  %103 = vmatpush1.msra.mxu0 0.0
  %104 = vmatprep.mubr.f32.mxu0 0.0
  %105 = vmatmul.mubr.f32.gmra.mrb[0].mxu0 %v34
  %v106 = vpop.f32.mrb[0].mxu0
  %v107 = vadd.f32 %v31, %v106
  %v108 = vpop.f32.mrb[0].mxu0
  %109 = vdwg.mxu0
  %v110 = vmax.f32 %v107, 0.0
  %v111 = vlaneseq
  %v112 = vshrl.u32 %v111, 7
  %v113 = vsub.s32 0, %v112
  %v114 = vrot.slane %v26, %v113
  %vm115 = vcmask 654336
  %v117 = vsel %vm115, %v110, 0
  %119 = vmatprep.subr.mxu0 0.0
  %120 = vmatpush1.msra.mxu0 %v16
  %121 = vmatprep.subr.mxu0 0.0
  %122 = vmatpush1.msra.mxu0 %v17
  %123 = vmatprep.subr.mxu0 0.0
  %124 = vmatpush1.msra.mxu0 %v18
  %125 = vmatprep.subr.mxu0 0.0
  %126 = vmatpush1.msra.mxu0 %v19
  %127 = vmatprep.subr.mxu0 0.0
  %128 = vmatpush1.msra.mxu0 %v20
  %129 = vmatprep.subr.mxu0 0.0
  %130 = vmatpush1.msra.mxu0 %v21
  %131 = vmatprep.subr.mxu0 0.0
  %132 = vmatpush1.msra.mxu0 %v22
  %133 = vmatprep.subr.mxu0 0.0
  %134 = vmatpush1.msra.mxu0 %v23
  %135 = vmatprep.subr.mxu0 0.0
  %136 = vmatpush1.msra.mxu0 %v24
  %137 = vmatprep.subr.mxu0 0.0
  %138 = vmatpush1.msra.mxu0 %v25
  %139 = vmatprep.subr.mxu0 0.0
  %140 = vmatpush1.msra.mxu0 0.0
  %141 = vmatprep.subr.mxu0 0.0
  %142 = vmatpush1.msra.mxu0 0.0
  %143 = vmatprep.subr.mxu0 0.0
  %144 = vmatpush1.msra.mxu0 0.0
  %145 = vmatprep.subr.mxu0 0.0
  %146 = vmatpush1.msra.mxu0 0.0
  %147 = vmatprep.subr.mxu0 0.0
  %148 = vmatpush1.msra.mxu0 0.0
  %149 = vmatprep.subr.mxu0 0.0
  %150 = vmatpush1.msra.mxu0 0.0
  %151 = vmatprep.subr.mxu0 0.0
  %152 = vmatpush1.msra.mxu0 0.0
  %153 = vmatprep.subr.mxu0 0.0
  %154 = vmatpush1.msra.mxu0 0.0
  %155 = vmatprep.subr.mxu0 0.0
  %156 = vmatpush1.msra.mxu0 0.0
  %157 = vmatprep.subr.mxu0 0.0
  %158 = vmatpush1.msra.mxu0 0.0
  %159 = vmatprep.subr.mxu0 0.0
  %160 = vmatpush1.msra.mxu0 0.0
  %161 = vmatprep.subr.mxu0 0.0
  %162 = vmatpush1.msra.mxu0 0.0
  %163 = vmatprep.subr.mxu0 0.0
  %164 = vmatpush1.msra.mxu0 0.0
  %165 = vmatprep.subr.mxu0 0.0
  %166 = vmatpush1.msra.mxu0 0.0
  %167 = vmatprep.subr.mxu0 0.0
  %168 = vmatpush1.msra.mxu0 0.0
  %169 = vmatprep.subr.mxu0 0.0
  %170 = vmatpush1.msra.mxu0 0.0
  %171 = vmatprep.subr.mxu0 0.0
  %172 = vmatpush1.msra.mxu0 0.0
  %173 = vmatprep.subr.mxu0 0.0
  %174 = vmatpush1.msra.mxu0 0.0
  %175 = vmatprep.subr.mxu0 0.0
  %176 = vmatpush1.msra.mxu0 0.0
  %177 = vmatprep.subr.mxu0 0.0
  %178 = vmatpush1.msra.mxu0 0.0
  %179 = vmatprep.subr.mxu0 0.0
  %180 = vmatpush1.msra.mxu0 0.0
  %181 = vmatprep.subr.mxu0 0.0
  %182 = vmatpush1.msra.mxu0 0.0
  %183 = vmatprep.mubr.f32.mxu0 0.0
  %184 = vmatmul.mubr.f32.gmra.mrb[0].mxu0 %v117
  %v185 = vpop.f32.mrb[0].mxu0
  %v186 = vadd.f32 %v114, %v185
  %v187 = vpop.f32.mrb[0].mxu0
  %188 = vdwg.mxu0
  %v189 = vmax.f32 %v186, 0.0
  %v190 = vld [vmem:[%s2] sm:$0xff]
  %v191 = vld [vmem:[%s2 + $0x8] sm:$0xff]
  %v192 = vld [vmem:[%s2 + $0x10] sm:$0xff]
  %v193 = vld [vmem:[%s2 + $0x18] sm:$0xff]
  %v194 = vld [vmem:[%s2 + $0x20] sm:$0xff]
  %v195 = vld [vmem:[%s2 + $0x28] sm:$0xff]
  %v196 = vld [vmem:[%s2 + $0x30] sm:$0xff]
  %v197 = vld [vmem:[%s2 + $0x38] sm:$0xff]
  %v198 = vld [vmem:[%s2 + $0x40] sm:$0xff]
  %v199 = vld [vmem:[%s2 + $0x48] sm:$0xff]
  %v200 = vld [vmem:[%s2 + $0x280] sm:$0x1]
  %v201 = vlaneseq
  %v202 = vshrl.u32 %v201, 7
  %v203 = vsub.s32 0, %v202
  %v204 = vrot.slane %v200, %v203
  %v206 = vsel %vm115, %v189, 0
  %208 = vmatprep.subr.mxu0 0.0
  %209 = vmatpush1.msra.mxu0 %v190
  %210 = vmatprep.subr.mxu0 0.0
  %211 = vmatpush1.msra.mxu0 %v191
  %212 = vmatprep.subr.mxu0 0.0
  %213 = vmatpush1.msra.mxu0 %v192
  %214 = vmatprep.subr.mxu0 0.0
  %215 = vmatpush1.msra.mxu0 %v193
  %216 = vmatprep.subr.mxu0 0.0
  %217 = vmatpush1.msra.mxu0 %v194
  %218 = vmatprep.subr.mxu0 0.0
  %219 = vmatpush1.msra.mxu0 %v195
  %220 = vmatprep.subr.mxu0 0.0
  %221 = vmatpush1.msra.mxu0 %v196
  %222 = vmatprep.subr.mxu0 0.0
  %223 = vmatpush1.msra.mxu0 %v197
  %224 = vmatprep.subr.mxu0 0.0
  %225 = vmatpush1.msra.mxu0 %v198
  %226 = vmatprep.subr.mxu0 0.0
  %227 = vmatpush1.msra.mxu0 %v199
  %228 = vmatprep.subr.mxu0 0.0
  %229 = vmatpush1.msra.mxu0 0.0
  %230 = vmatprep.subr.mxu0 0.0
  %231 = vmatpush1.msra.mxu0 0.0
  %232 = vmatprep.subr.mxu0 0.0
  %233 = vmatpush1.msra.mxu0 0.0
  %234 = vmatprep.subr.mxu0 0.0
  %235 = vmatpush1.msra.mxu0 0.0
  %236 = vmatprep.subr.mxu0 0.0
  %237 = vmatpush1.msra.mxu0 0.0
  %238 = vmatprep.subr.mxu0 0.0
  %239 = vmatpush1.msra.mxu0 0.0
  %240 = vmatprep.subr.mxu0 0.0
  %241 = vmatpush1.msra.mxu0 0.0
  %242 = vmatprep.subr.mxu0 0.0
  %243 = vmatpush1.msra.mxu0 0.0
  %244 = vmatprep.subr.mxu0 0.0
  %245 = vmatpush1.msra.mxu0 0.0
  %246 = vmatprep.subr.mxu0 0.0
  %247 = vmatpush1.msra.mxu0 0.0
  %248 = vmatprep.subr.mxu0 0.0
  %249 = vmatpush1.msra.mxu0 0.0
  %250 = vmatprep.subr.mxu0 0.0
  %251 = vmatpush1.msra.mxu0 0.0
  %252 = vmatprep.subr.mxu0 0.0
  %253 = vmatpush1.msra.mxu0 0.0
  %254 = vmatprep.subr.mxu0 0.0
  %255 = vmatpush1.msra.mxu0 0.0
  %256 = vmatprep.subr.mxu0 0.0
  %257 = vmatpush1.msra.mxu0 0.0
  %258 = vmatprep.subr.mxu0 0.0
  %259 = vmatpush1.msra.mxu0 0.0
  %260 = vmatprep.subr.mxu0 0.0
  %261 = vmatpush1.msra.mxu0 0.0
  %262 = vmatprep.subr.mxu0 0.0
  %263 = vmatpush1.msra.mxu0 0.0
  %264 = vmatprep.subr.mxu0 0.0
  %265 = vmatpush1.msra.mxu0 0.0
  %266 = vmatprep.subr.mxu0 0.0
  %267 = vmatpush1.msra.mxu0 0.0
  %268 = vmatprep.subr.mxu0 0.0
  %269 = vmatpush1.msra.mxu0 0.0
  %270 = vmatprep.subr.mxu0 0.0
  %271 = vmatpush1.msra.mxu0 0.0
  %272 = vmatprep.mubr.f32.mxu0 0.0
  %273 = vmatmul.mubr.f32.gmra.mrb[0].mxu0 %v206
  %v274 = vpop.f32.mrb[0].mxu0
  %v275 = vadd.f32 %v204, %v274
  %v276 = vpop.f32.mrb[0].mxu0
  %277 = vdwg.mxu0
  %vm278 = vcmask 73728
  %279 = vst.msk [vmem:[#allocation2] sm:$0x1] %vm278, %v275
  %vm280 = vcmask 74753
  %281 = vst.msk [vmem:[#allocation2 + $0x7] sm:$0x2] %vm280, %v275
  %v282 = vld [vmem:[%s2 + $0x50] sm:$0xff]
  %v283 = vld [vmem:[%s2 + $0x58] sm:$0xff]
  %v284 = vld [vmem:[%s2 + $0x60] sm:$0xff]
  %v285 = vld [vmem:[%s2 + $0x68] sm:$0xff]
  %v286 = vld [vmem:[%s2 + $0x70] sm:$0xff]
  %v287 = vld [vmem:[%s2 + $0x78] sm:$0xff]
  %v288 = vld [vmem:[%s2 + $0x80] sm:$0xff]
  %v289 = vld [vmem:[%s2 + $0x88] sm:$0xff]
  %v290 = vld [vmem:[%s2 + $0x90] sm:$0xff]
  %v291 = vld [vmem:[%s2 + $0x98] sm:$0xff]
  %v292 = vld [vmem:[%s2 + $0x281] sm:$0x1]
  %v293 = vlaneseq
  %v294 = vshrl.u32 %v293, 7
  %v295 = vsub.s32 0, %v294
  %v296 = vrot.slane %v292, %v295
  %297 = vmatprep.subr.mxu0 0.0
  %298 = vmatpush1.msra.mxu0 %v282
  %299 = vmatprep.subr.mxu0 0.0
  %300 = vmatpush1.msra.mxu0 %v283
  %301 = vmatprep.subr.mxu0 0.0
  %302 = vmatpush1.msra.mxu0 %v284
  %303 = vmatprep.subr.mxu0 0.0
  %304 = vmatpush1.msra.mxu0 %v285
  %305 = vmatprep.subr.mxu0 0.0
  %306 = vmatpush1.msra.mxu0 %v286
  %307 = vmatprep.subr.mxu0 0.0
  %308 = vmatpush1.msra.mxu0 %v287
  %309 = vmatprep.subr.mxu0 0.0
  %310 = vmatpush1.msra.mxu0 %v288
  %311 = vmatprep.subr.mxu0 0.0
  %312 = vmatpush1.msra.mxu0 %v289
  %313 = vmatprep.subr.mxu0 0.0
  %314 = vmatpush1.msra.mxu0 %v290
  %315 = vmatprep.subr.mxu0 0.0
  %316 = vmatpush1.msra.mxu0 %v291
  %317 = vmatprep.subr.mxu0 0.0
  %318 = vmatpush1.msra.mxu0 0.0
  %319 = vmatprep.subr.mxu0 0.0
  %320 = vmatpush1.msra.mxu0 0.0
  %321 = vmatprep.subr.mxu0 0.0
  %322 = vmatpush1.msra.mxu0 0.0
  %323 = vmatprep.subr.mxu0 0.0
  %324 = vmatpush1.msra.mxu0 0.0
  %325 = vmatprep.subr.mxu0 0.0
  %326 = vmatpush1.msra.mxu0 0.0
  %327 = vmatprep.subr.mxu0 0.0
  %328 = vmatpush1.msra.mxu0 0.0
  %329 = vmatprep.subr.mxu0 0.0
  %330 = vmatpush1.msra.mxu0 0.0
  %331 = vmatprep.subr.mxu0 0.0
  %332 = vmatpush1.msra.mxu0 0.0
  %333 = vmatprep.subr.mxu0 0.0
  %334 = vmatpush1.msra.mxu0 0.0
  %335 = vmatprep.subr.mxu0 0.0
  %336 = vmatpush1.msra.mxu0 0.0
  %337 = vmatprep.subr.mxu0 0.0
  %338 = vmatpush1.msra.mxu0 0.0
  %339 = vmatprep.subr.mxu0 0.0
  %340 = vmatpush1.msra.mxu0 0.0
  %341 = vmatprep.subr.mxu0 0.0
  %342 = vmatpush1.msra.mxu0 0.0
  %343 = vmatprep.subr.mxu0 0.0
  %344 = vmatpush1.msra.mxu0 0.0
  %345 = vmatprep.subr.mxu0 0.0
  %346 = vmatpush1.msra.mxu0 0.0
  %347 = vmatprep.subr.mxu0 0.0
  %348 = vmatpush1.msra.mxu0 0.0
  %349 = vmatprep.subr.mxu0 0.0
  %350 = vmatpush1.msra.mxu0 0.0
  %351 = vmatprep.subr.mxu0 0.0
  %352 = vmatpush1.msra.mxu0 0.0
  %353 = vmatprep.subr.mxu0 0.0
  %354 = vmatpush1.msra.mxu0 0.0
  %355 = vmatprep.subr.mxu0 0.0
  %356 = vmatpush1.msra.mxu0 0.0
  %357 = vmatprep.subr.mxu0 0.0
  %358 = vmatpush1.msra.mxu0 0.0
  %359 = vmatprep.subr.mxu0 0.0
  %360 = vmatpush1.msra.mxu0 0.0
  %361 = vmatprep.mubr.f32.mxu0 0.0
  %362 = vmatmul.mubr.f32.gmra.mrb[0].mxu0 %v206
  %v363 = vpop.f32.mrb[0].mxu0
  %v364 = vadd.f32 %v296, %v363
  %v365 = vpop.f32.mrb[0].mxu0
  %366 = vdwg.mxu0
  %367 = vst.msk [vmem:[#allocation2 + $0x1] sm:$0x1] %vm278, %v364
  %368 = vst.msk [vmem:[#allocation2 + $0x8] sm:$0x2] %vm280, %v364
  %v369 = vld [vmem:[%s2 + $0xa0] sm:$0xff]
  %v370 = vld [vmem:[%s2 + $0xa8] sm:$0xff]
  %v371 = vld [vmem:[%s2 + $0xb0] sm:$0xff]
  %v372 = vld [vmem:[%s2 + $0xb8] sm:$0xff]
  %v373 = vld [vmem:[%s2 + $0xc0] sm:$0xff]
  %v374 = vld [vmem:[%s2 + $0xc8] sm:$0xff]
  %v375 = vld [vmem:[%s2 + $0xd0] sm:$0xff]
  %v376 = vld [vmem:[%s2 + $0xd8] sm:$0xff]
  %v377 = vld [vmem:[%s2 + $0xe0] sm:$0xff]
  %v378 = vld [vmem:[%s2 + $0xe8] sm:$0xff]
  %v379 = vld [vmem:[%s2 + $0x282] sm:$0x1]
  %v380 = vlaneseq
  %v381 = vshrl.u32 %v380, 7
  %v382 = vsub.s32 0, %v381
  %v383 = vrot.slane %v379, %v382
  %384 = vmatprep.subr.mxu0 0.0
  %385 = vmatpush1.msra.mxu0 %v369
  %386 = vmatprep.subr.mxu0 0.0
  %387 = vmatpush1.msra.mxu0 %v370
  %388 = vmatprep.subr.mxu0 0.0
  %389 = vmatpush1.msra.mxu0 %v371
  %390 = vmatprep.subr.mxu0 0.0
  %391 = vmatpush1.msra.mxu0 %v372
  %392 = vmatprep.subr.mxu0 0.0
  %393 = vmatpush1.msra.mxu0 %v373
  %394 = vmatprep.subr.mxu0 0.0
  %395 = vmatpush1.msra.mxu0 %v374
  %396 = vmatprep.subr.mxu0 0.0
  %397 = vmatpush1.msra.mxu0 %v375
  %398 = vmatprep.subr.mxu0 0.0
  %399 = vmatpush1.msra.mxu0 %v376
  %400 = vmatprep.subr.mxu0 0.0
  %401 = vmatpush1.msra.mxu0 %v377
  %402 = vmatprep.subr.mxu0 0.0
  %403 = vmatpush1.msra.mxu0 %v378
  %404 = vmatprep.subr.mxu0 0.0
  %405 = vmatpush1.msra.mxu0 0.0
  %406 = vmatprep.subr.mxu0 0.0
  %407 = vmatpush1.msra.mxu0 0.0
  %408 = vmatprep.subr.mxu0 0.0
  %409 = vmatpush1.msra.mxu0 0.0
  %410 = vmatprep.subr.mxu0 0.0
  %411 = vmatpush1.msra.mxu0 0.0
  %412 = vmatprep.subr.mxu0 0.0
  %413 = vmatpush1.msra.mxu0 0.0
  %414 = vmatprep.subr.mxu0 0.0
  %415 = vmatpush1.msra.mxu0 0.0
  %416 = vmatprep.subr.mxu0 0.0
  %417 = vmatpush1.msra.mxu0 0.0
  %418 = vmatprep.subr.mxu0 0.0
  %419 = vmatpush1.msra.mxu0 0.0
  %420 = vmatprep.subr.mxu0 0.0
  %421 = vmatpush1.msra.mxu0 0.0
  %422 = vmatprep.subr.mxu0 0.0
  %423 = vmatpush1.msra.mxu0 0.0
  %424 = vmatprep.subr.mxu0 0.0
  %425 = vmatpush1.msra.mxu0 0.0
  %426 = vmatprep.subr.mxu0 0.0
  %427 = vmatpush1.msra.mxu0 0.0
  %428 = vmatprep.subr.mxu0 0.0
  %429 = vmatpush1.msra.mxu0 0.0
  %430 = vmatprep.subr.mxu0 0.0
  %431 = vmatpush1.msra.mxu0 0.0
  %432 = vmatprep.subr.mxu0 0.0
  %433 = vmatpush1.msra.mxu0 0.0
  %434 = vmatprep.subr.mxu0 0.0
  %435 = vmatpush1.msra.mxu0 0.0
  %436 = vmatprep.subr.mxu0 0.0
  %437 = vmatpush1.msra.mxu0 0.0
  %438 = vmatprep.subr.mxu0 0.0
  %439 = vmatpush1.msra.mxu0 0.0
  %440 = vmatprep.subr.mxu0 0.0
  %441 = vmatpush1.msra.mxu0 0.0
  %442 = vmatprep.subr.mxu0 0.0
  %443 = vmatpush1.msra.mxu0 0.0
  %444 = vmatprep.subr.mxu0 0.0
  %445 = vmatpush1.msra.mxu0 0.0
  %446 = vmatprep.subr.mxu0 0.0
  %447 = vmatpush1.msra.mxu0 0.0
  %448 = vmatprep.mubr.f32.mxu0 0.0
  %449 = vmatmul.mubr.f32.gmra.mrb[0].mxu0 %v206
  %v450 = vpop.f32.mrb[0].mxu0
  %v451 = vadd.f32 %v383, %v450
  %v452 = vpop.f32.mrb[0].mxu0
  %453 = vdwg.mxu0
  %454 = vst.msk [vmem:[#allocation2 + $0x2] sm:$0x1] %vm278, %v451
  %455 = vst.msk [vmem:[#allocation2 + $0x9] sm:$0x2] %vm280, %v451
  %v456 = vld [vmem:[%s2 + $0xf0] sm:$0xff]
  %v457 = vld [vmem:[%s2 + $0xf8] sm:$0xff]
  %v458 = vld [vmem:[%s2 + $0x100] sm:$0xff]
  %v459 = vld [vmem:[%s2 + $0x108] sm:$0xff]
  %v460 = vld [vmem:[%s2 + $0x110] sm:$0xff]
  %v461 = vld [vmem:[%s2 + $0x118] sm:$0xff]
  %v462 = vld [vmem:[%s2 + $0x120] sm:$0xff]
  %v463 = vld [vmem:[%s2 + $0x128] sm:$0xff]
  %v464 = vld [vmem:[%s2 + $0x130] sm:$0xff]
  %v465 = vld [vmem:[%s2 + $0x138] sm:$0xff]
  %v466 = vld [vmem:[%s2 + $0x283] sm:$0x1]
  %v467 = vlaneseq
  %v468 = vshrl.u32 %v467, 7
  %v469 = vsub.s32 0, %v468
  %v470 = vrot.slane %v466, %v469
  %471 = vmatprep.subr.mxu0 0.0
  %472 = vmatpush1.msra.mxu0 %v456
  %473 = vmatprep.subr.mxu0 0.0
  %474 = vmatpush1.msra.mxu0 %v457
  %475 = vmatprep.subr.mxu0 0.0
  %476 = vmatpush1.msra.mxu0 %v458
  %477 = vmatprep.subr.mxu0 0.0
  %478 = vmatpush1.msra.mxu0 %v459
  %479 = vmatprep.subr.mxu0 0.0
  %480 = vmatpush1.msra.mxu0 %v460
  %481 = vmatprep.subr.mxu0 0.0
  %482 = vmatpush1.msra.mxu0 %v461
  %483 = vmatprep.subr.mxu0 0.0
  %484 = vmatpush1.msra.mxu0 %v462
  %485 = vmatprep.subr.mxu0 0.0
  %486 = vmatpush1.msra.mxu0 %v463
  %487 = vmatprep.subr.mxu0 0.0
  %488 = vmatpush1.msra.mxu0 %v464
  %489 = vmatprep.subr.mxu0 0.0
  %490 = vmatpush1.msra.mxu0 %v465
  %491 = vmatprep.subr.mxu0 0.0
  %492 = vmatpush1.msra.mxu0 0.0
  %493 = vmatprep.subr.mxu0 0.0
  %494 = vmatpush1.msra.mxu0 0.0
  %495 = vmatprep.subr.mxu0 0.0
  %496 = vmatpush1.msra.mxu0 0.0
  %497 = vmatprep.subr.mxu0 0.0
  %498 = vmatpush1.msra.mxu0 0.0
  %499 = vmatprep.subr.mxu0 0.0
  %500 = vmatpush1.msra.mxu0 0.0
  %501 = vmatprep.subr.mxu0 0.0
  %502 = vmatpush1.msra.mxu0 0.0
  %503 = vmatprep.subr.mxu0 0.0
  %504 = vmatpush1.msra.mxu0 0.0
  %505 = vmatprep.subr.mxu0 0.0
  %506 = vmatpush1.msra.mxu0 0.0
  %507 = vmatprep.subr.mxu0 0.0
  %508 = vmatpush1.msra.mxu0 0.0
  %509 = vmatprep.subr.mxu0 0.0
  %510 = vmatpush1.msra.mxu0 0.0
  %511 = vmatprep.subr.mxu0 0.0
  %512 = vmatpush1.msra.mxu0 0.0
  %513 = vmatprep.subr.mxu0 0.0
  %514 = vmatpush1.msra.mxu0 0.0
  %515 = vmatprep.subr.mxu0 0.0
  %516 = vmatpush1.msra.mxu0 0.0
  %517 = vmatprep.subr.mxu0 0.0
  %518 = vmatpush1.msra.mxu0 0.0
  %519 = vmatprep.subr.mxu0 0.0
  %520 = vmatpush1.msra.mxu0 0.0
  %521 = vmatprep.subr.mxu0 0.0
  %522 = vmatpush1.msra.mxu0 0.0
  %523 = vmatprep.subr.mxu0 0.0
  %524 = vmatpush1.msra.mxu0 0.0
  %525 = vmatprep.subr.mxu0 0.0
  %526 = vmatpush1.msra.mxu0 0.0
  %527 = vmatprep.subr.mxu0 0.0
  %528 = vmatpush1.msra.mxu0 0.0
  %529 = vmatprep.subr.mxu0 0.0
  %530 = vmatpush1.msra.mxu0 0.0
  %531 = vmatprep.subr.mxu0 0.0
  %532 = vmatpush1.msra.mxu0 0.0
  %533 = vmatprep.subr.mxu0 0.0
  %534 = vmatpush1.msra.mxu0 0.0
  %535 = vmatprep.mubr.f32.mxu0 0.0
  %536 = vmatmul.mubr.f32.gmra.mrb[0].mxu0 %v206
  %v537 = vpop.f32.mrb[0].mxu0
  %v538 = vadd.f32 %v470, %v537
  %v539 = vpop.f32.mrb[0].mxu0
  %540 = vdwg.mxu0
  %541 = vst.msk [vmem:[#allocation2 + $0x3] sm:$0x1] %vm278, %v538
  %542 = vst.msk [vmem:[#allocation2 + $0xa] sm:$0x2] %vm280, %v538
  %v543 = vld [vmem:[%s2 + $0x140] sm:$0xff]
  %v544 = vld [vmem:[%s2 + $0x148] sm:$0xff]
  %v545 = vld [vmem:[%s2 + $0x150] sm:$0xff]
  %v546 = vld [vmem:[%s2 + $0x158] sm:$0xff]
  %v547 = vld [vmem:[%s2 + $0x160] sm:$0xff]
  %v548 = vld [vmem:[%s2 + $0x168] sm:$0xff]
  %v549 = vld [vmem:[%s2 + $0x170] sm:$0xff]
  %v550 = vld [vmem:[%s2 + $0x178] sm:$0xff]
  %v551 = vld [vmem:[%s2 + $0x180] sm:$0xff]
  %v552 = vld [vmem:[%s2 + $0x188] sm:$0xff]
  %v553 = vld [vmem:[%s2 + $0x284] sm:$0x1]
  %v554 = vlaneseq
  %v555 = vshrl.u32 %v554, 7
  %v556 = vsub.s32 0, %v555
  %v557 = vrot.slane %v553, %v556
  %558 = vmatprep.subr.mxu0 0.0
  %559 = vmatpush1.msra.mxu0 %v543
  %560 = vmatprep.subr.mxu0 0.0
  %561 = vmatpush1.msra.mxu0 %v544
  %562 = vmatprep.subr.mxu0 0.0
  %563 = vmatpush1.msra.mxu0 %v545
  %564 = vmatprep.subr.mxu0 0.0
  %565 = vmatpush1.msra.mxu0 %v546
  %566 = vmatprep.subr.mxu0 0.0
  %567 = vmatpush1.msra.mxu0 %v547
  %568 = vmatprep.subr.mxu0 0.0
  %569 = vmatpush1.msra.mxu0 %v548
  %570 = vmatprep.subr.mxu0 0.0
  %571 = vmatpush1.msra.mxu0 %v549
  %572 = vmatprep.subr.mxu0 0.0
  %573 = vmatpush1.msra.mxu0 %v550
  %574 = vmatprep.subr.mxu0 0.0
  %575 = vmatpush1.msra.mxu0 %v551
  %576 = vmatprep.subr.mxu0 0.0
  %577 = vmatpush1.msra.mxu0 %v552
  %578 = vmatprep.subr.mxu0 0.0
  %579 = vmatpush1.msra.mxu0 0.0
  %580 = vmatprep.subr.mxu0 0.0
  %581 = vmatpush1.msra.mxu0 0.0
  %582 = vmatprep.subr.mxu0 0.0
  %583 = vmatpush1.msra.mxu0 0.0
  %584 = vmatprep.subr.mxu0 0.0
  %585 = vmatpush1.msra.mxu0 0.0
  %586 = vmatprep.subr.mxu0 0.0
  %587 = vmatpush1.msra.mxu0 0.0
  %588 = vmatprep.subr.mxu0 0.0
  %589 = vmatpush1.msra.mxu0 0.0
  %590 = vmatprep.subr.mxu0 0.0
  %591 = vmatpush1.msra.mxu0 0.0
  %592 = vmatprep.subr.mxu0 0.0
  %593 = vmatpush1.msra.mxu0 0.0
  %594 = vmatprep.subr.mxu0 0.0
  %595 = vmatpush1.msra.mxu0 0.0
  %596 = vmatprep.subr.mxu0 0.0
  %597 = vmatpush1.msra.mxu0 0.0
  %598 = vmatprep.subr.mxu0 0.0
  %599 = vmatpush1.msra.mxu0 0.0
  %600 = vmatprep.subr.mxu0 0.0
  %601 = vmatpush1.msra.mxu0 0.0
  %602 = vmatprep.subr.mxu0 0.0
  %603 = vmatpush1.msra.mxu0 0.0
  %604 = vmatprep.subr.mxu0 0.0
  %605 = vmatpush1.msra.mxu0 0.0
  %606 = vmatprep.subr.mxu0 0.0
  %607 = vmatpush1.msra.mxu0 0.0
  %608 = vmatprep.subr.mxu0 0.0
  %609 = vmatpush1.msra.mxu0 0.0
  %610 = vmatprep.subr.mxu0 0.0
  %611 = vmatpush1.msra.mxu0 0.0
  %612 = vmatprep.subr.mxu0 0.0
  %613 = vmatpush1.msra.mxu0 0.0
  %614 = vmatprep.subr.mxu0 0.0
  %615 = vmatpush1.msra.mxu0 0.0
  %616 = vmatprep.subr.mxu0 0.0
  %617 = vmatpush1.msra.mxu0 0.0
  %618 = vmatprep.subr.mxu0 0.0
  %619 = vmatpush1.msra.mxu0 0.0
  %620 = vmatprep.subr.mxu0 0.0
  %621 = vmatpush1.msra.mxu0 0.0
  %622 = vmatprep.mubr.f32.mxu0 0.0
  %623 = vmatmul.mubr.f32.gmra.mrb[0].mxu0 %v206
  %v624 = vpop.f32.mrb[0].mxu0
  %v625 = vadd.f32 %v557, %v624
  %v626 = vpop.f32.mrb[0].mxu0
  %627 = vdwg.mxu0
  %628 = vst.msk [vmem:[#allocation2 + $0x4] sm:$0x1] %vm278, %v625
  %629 = vst.msk [vmem:[#allocation2 + $0xb] sm:$0x2] %vm280, %v625
  %v630 = vld [vmem:[%s2 + $0x190] sm:$0xff]
  %v631 = vld [vmem:[%s2 + $0x198] sm:$0xff]
  %v632 = vld [vmem:[%s2 + $0x1a0] sm:$0xff]
  %v633 = vld [vmem:[%s2 + $0x1a8] sm:$0xff]
  %v634 = vld [vmem:[%s2 + $0x1b0] sm:$0xff]
  %v635 = vld [vmem:[%s2 + $0x1b8] sm:$0xff]
  %v636 = vld [vmem:[%s2 + $0x1c0] sm:$0xff]
  %v637 = vld [vmem:[%s2 + $0x1c8] sm:$0xff]
  %v638 = vld [vmem:[%s2 + $0x1d0] sm:$0xff]
  %v639 = vld [vmem:[%s2 + $0x1d8] sm:$0xff]
  %v640 = vld [vmem:[%s2 + $0x285] sm:$0x1]
  %v641 = vlaneseq
  %v642 = vshrl.u32 %v641, 7
  %v643 = vsub.s32 0, %v642
  %v644 = vrot.slane %v640, %v643
  %645 = vmatprep.subr.mxu0 0.0
  %646 = vmatpush1.msra.mxu0 %v630
  %647 = vmatprep.subr.mxu0 0.0
  %648 = vmatpush1.msra.mxu0 %v631
  %649 = vmatprep.subr.mxu0 0.0
  %650 = vmatpush1.msra.mxu0 %v632
  %651 = vmatprep.subr.mxu0 0.0
  %652 = vmatpush1.msra.mxu0 %v633
  %653 = vmatprep.subr.mxu0 0.0
  %654 = vmatpush1.msra.mxu0 %v634
  %655 = vmatprep.subr.mxu0 0.0
  %656 = vmatpush1.msra.mxu0 %v635
  %657 = vmatprep.subr.mxu0 0.0
  %658 = vmatpush1.msra.mxu0 %v636
  %659 = vmatprep.subr.mxu0 0.0
  %660 = vmatpush1.msra.mxu0 %v637
  %661 = vmatprep.subr.mxu0 0.0
  %662 = vmatpush1.msra.mxu0 %v638
  %663 = vmatprep.subr.mxu0 0.0
  %664 = vmatpush1.msra.mxu0 %v639
  %665 = vmatprep.subr.mxu0 0.0
  %666 = vmatpush1.msra.mxu0 0.0
  %667 = vmatprep.subr.mxu0 0.0
  %668 = vmatpush1.msra.mxu0 0.0
  %669 = vmatprep.subr.mxu0 0.0
  %670 = vmatpush1.msra.mxu0 0.0
  %671 = vmatprep.subr.mxu0 0.0
  %672 = vmatpush1.msra.mxu0 0.0
  %673 = vmatprep.subr.mxu0 0.0
  %674 = vmatpush1.msra.mxu0 0.0
  %675 = vmatprep.subr.mxu0 0.0
  %676 = vmatpush1.msra.mxu0 0.0
  %677 = vmatprep.subr.mxu0 0.0
  %678 = vmatpush1.msra.mxu0 0.0
  %679 = vmatprep.subr.mxu0 0.0
  %680 = vmatpush1.msra.mxu0 0.0
  %681 = vmatprep.subr.mxu0 0.0
  %682 = vmatpush1.msra.mxu0 0.0
  %683 = vmatprep.subr.mxu0 0.0
  %684 = vmatpush1.msra.mxu0 0.0
  %685 = vmatprep.subr.mxu0 0.0
  %686 = vmatpush1.msra.mxu0 0.0
  %687 = vmatprep.subr.mxu0 0.0
  %688 = vmatpush1.msra.mxu0 0.0
  %689 = vmatprep.subr.mxu0 0.0
  %690 = vmatpush1.msra.mxu0 0.0
  %691 = vmatprep.subr.mxu0 0.0
  %692 = vmatpush1.msra.mxu0 0.0
  %693 = vmatprep.subr.mxu0 0.0
  %694 = vmatpush1.msra.mxu0 0.0
  %695 = vmatprep.subr.mxu0 0.0
  %696 = vmatpush1.msra.mxu0 0.0
  %697 = vmatprep.subr.mxu0 0.0
  %698 = vmatpush1.msra.mxu0 0.0
  %699 = vmatprep.subr.mxu0 0.0
  %700 = vmatpush1.msra.mxu0 0.0
  %701 = vmatprep.subr.mxu0 0.0
  %702 = vmatpush1.msra.mxu0 0.0
  %703 = vmatprep.subr.mxu0 0.0
  %704 = vmatpush1.msra.mxu0 0.0
  %705 = vmatprep.subr.mxu0 0.0
  %706 = vmatpush1.msra.mxu0 0.0
  %707 = vmatprep.subr.mxu0 0.0
  %708 = vmatpush1.msra.mxu0 0.0
  %709 = vmatprep.mubr.f32.mxu0 0.0
  %710 = vmatmul.mubr.f32.gmra.mrb[0].mxu0 %v206
  %v711 = vpop.f32.mrb[0].mxu0
  %v712 = vadd.f32 %v644, %v711
  %v713 = vpop.f32.mrb[0].mxu0
  %714 = vdwg.mxu0
  %715 = vst.msk [vmem:[#allocation2 + $0x5] sm:$0x1] %vm278, %v712
  %716 = vst.msk [vmem:[#allocation2 + $0xc] sm:$0x2] %vm280, %v712
  %v717 = vld [vmem:[%s2 + $0x1e0] sm:$0xff]
  %v718 = vld [vmem:[%s2 + $0x1e8] sm:$0xff]
  %v719 = vld [vmem:[%s2 + $0x1f0] sm:$0xff]
  %v720 = vld [vmem:[%s2 + $0x1f8] sm:$0xff]
  %v721 = vld [vmem:[%s2 + $0x200] sm:$0xff]
  %v722 = vld [vmem:[%s2 + $0x208] sm:$0xff]
  %v723 = vld [vmem:[%s2 + $0x210] sm:$0xff]
  %v724 = vld [vmem:[%s2 + $0x218] sm:$0xff]
  %v725 = vld [vmem:[%s2 + $0x220] sm:$0xff]
  %v726 = vld [vmem:[%s2 + $0x228] sm:$0xff]
  %v727 = vld [vmem:[%s2 + $0x286] sm:$0x1]
  %v728 = vlaneseq
  %v729 = vshrl.u32 %v728, 7
  %v730 = vsub.s32 0, %v729
  %v731 = vrot.slane %v727, %v730
  %732 = vmatprep.subr.mxu0 0.0
  %733 = vmatpush1.msra.mxu0 %v717
  %734 = vmatprep.subr.mxu0 0.0
  %735 = vmatpush1.msra.mxu0 %v718
  %736 = vmatprep.subr.mxu0 0.0
  %737 = vmatpush1.msra.mxu0 %v719
  %738 = vmatprep.subr.mxu0 0.0
  %739 = vmatpush1.msra.mxu0 %v720
  %740 = vmatprep.subr.mxu0 0.0
  %741 = vmatpush1.msra.mxu0 %v721
  %742 = vmatprep.subr.mxu0 0.0
  %743 = vmatpush1.msra.mxu0 %v722
  %744 = vmatprep.subr.mxu0 0.0
  %745 = vmatpush1.msra.mxu0 %v723
  %746 = vmatprep.subr.mxu0 0.0
  %747 = vmatpush1.msra.mxu0 %v724
  %748 = vmatprep.subr.mxu0 0.0
  %749 = vmatpush1.msra.mxu0 %v725
  %750 = vmatprep.subr.mxu0 0.0
  %751 = vmatpush1.msra.mxu0 %v726
  %752 = vmatprep.subr.mxu0 0.0
  %753 = vmatpush1.msra.mxu0 0.0
  %754 = vmatprep.subr.mxu0 0.0
  %755 = vmatpush1.msra.mxu0 0.0
  %756 = vmatprep.subr.mxu0 0.0
  %757 = vmatpush1.msra.mxu0 0.0
  %758 = vmatprep.subr.mxu0 0.0
  %759 = vmatpush1.msra.mxu0 0.0
  %760 = vmatprep.subr.mxu0 0.0
  %761 = vmatpush1.msra.mxu0 0.0
  %762 = vmatprep.subr.mxu0 0.0
  %763 = vmatpush1.msra.mxu0 0.0
  %764 = vmatprep.subr.mxu0 0.0
  %765 = vmatpush1.msra.mxu0 0.0
  %766 = vmatprep.subr.mxu0 0.0
  %767 = vmatpush1.msra.mxu0 0.0
  %768 = vmatprep.subr.mxu0 0.0
  %769 = vmatpush1.msra.mxu0 0.0
  %770 = vmatprep.subr.mxu0 0.0
  %771 = vmatpush1.msra.mxu0 0.0
  %772 = vmatprep.subr.mxu0 0.0
  %773 = vmatpush1.msra.mxu0 0.0
  %774 = vmatprep.subr.mxu0 0.0
  %775 = vmatpush1.msra.mxu0 0.0
  %776 = vmatprep.subr.mxu0 0.0
  %777 = vmatpush1.msra.mxu0 0.0
  %778 = vmatprep.subr.mxu0 0.0
  %779 = vmatpush1.msra.mxu0 0.0
  %780 = vmatprep.subr.mxu0 0.0
  %781 = vmatpush1.msra.mxu0 0.0
  %782 = vmatprep.subr.mxu0 0.0
  %783 = vmatpush1.msra.mxu0 0.0
  %784 = vmatprep.subr.mxu0 0.0
  %785 = vmatpush1.msra.mxu0 0.0
  %786 = vmatprep.subr.mxu0 0.0
  %787 = vmatpush1.msra.mxu0 0.0
  %788 = vmatprep.subr.mxu0 0.0
  %789 = vmatpush1.msra.mxu0 0.0
  %790 = vmatprep.subr.mxu0 0.0
  %791 = vmatpush1.msra.mxu0 0.0
  %792 = vmatprep.subr.mxu0 0.0
  %793 = vmatpush1.msra.mxu0 0.0
  %794 = vmatprep.subr.mxu0 0.0
  %795 = vmatpush1.msra.mxu0 0.0
  %796 = vmatprep.mubr.f32.mxu0 0.0
  %797 = vmatmul.mubr.f32.gmra.mrb[0].mxu0 %v206
  %v798 = vpop.f32.mrb[0].mxu0
  %v799 = vadd.f32 %v731, %v798
  %v800 = vpop.f32.mrb[0].mxu0
  %801 = vdwg.mxu0
  %802 = vst.msk [vmem:[#allocation2 + $0x6] sm:$0x1] %vm278, %v799
  %803 = vst.msk [vmem:[#allocation2 + $0xd] sm:$0x2] %vm280, %v799
  %v804 = vld [vmem:[%s2 + $0x230] sm:$0xff]
  %v805 = vld [vmem:[%s2 + $0x238] sm:$0xff]
  %v806 = vld [vmem:[%s2 + $0x240] sm:$0xff]
  %v807 = vld [vmem:[%s2 + $0x248] sm:$0xff]
  %v808 = vld [vmem:[%s2 + $0x250] sm:$0xff]
  %v809 = vld [vmem:[%s2 + $0x258] sm:$0xff]
  %v810 = vld [vmem:[%s2 + $0x260] sm:$0xff]
  %v811 = vld [vmem:[%s2 + $0x268] sm:$0xff]
  %v812 = vld [vmem:[%s2 + $0x270] sm:$0xff]
  %v813 = vld [vmem:[%s2 + $0x278] sm:$0xff]
  %v814 = vld [vmem:[%s2 + $0x287] sm:$0x1]
  %v815 = vlaneseq
  %v816 = vshrl.u32 %v815, 7
  %v817 = vsub.s32 0, %v816
  %v818 = vrot.slane %v814, %v817
  %819 = vmatprep.subr.mxu0 0.0
  %820 = vmatpush1.msra.mxu0 %v804
  %821 = vmatprep.subr.mxu0 0.0
  %822 = vmatpush1.msra.mxu0 %v805
  %823 = vmatprep.subr.mxu0 0.0
  %824 = vmatpush1.msra.mxu0 %v806
  %825 = vmatprep.subr.mxu0 0.0
  %826 = vmatpush1.msra.mxu0 %v807
  %827 = vmatprep.subr.mxu0 0.0
  %828 = vmatpush1.msra.mxu0 %v808
  %829 = vmatprep.subr.mxu0 0.0
  %830 = vmatpush1.msra.mxu0 %v809
  %831 = vmatprep.subr.mxu0 0.0
  %832 = vmatpush1.msra.mxu0 %v810
  %833 = vmatprep.subr.mxu0 0.0
  %834 = vmatpush1.msra.mxu0 %v811
  %835 = vmatprep.subr.mxu0 0.0
  %836 = vmatpush1.msra.mxu0 %v812
  %837 = vmatprep.subr.mxu0 0.0
  %838 = vmatpush1.msra.mxu0 %v813
  %839 = vmatprep.subr.mxu0 0.0
  %840 = vmatpush1.msra.mxu0 0.0
  %841 = vmatprep.subr.mxu0 0.0
  %842 = vmatpush1.msra.mxu0 0.0
  %843 = vmatprep.subr.mxu0 0.0
  %844 = vmatpush1.msra.mxu0 0.0
  %845 = vmatprep.subr.mxu0 0.0
  %846 = vmatpush1.msra.mxu0 0.0
  %847 = vmatprep.subr.mxu0 0.0
  %848 = vmatpush1.msra.mxu0 0.0
  %849 = vmatprep.subr.mxu0 0.0
  %850 = vmatpush1.msra.mxu0 0.0
  %851 = vmatprep.subr.mxu0 0.0
  %852 = vmatpush1.msra.mxu0 0.0
  %853 = vmatprep.subr.mxu0 0.0
  %854 = vmatpush1.msra.mxu0 0.0
  %855 = vmatprep.subr.mxu0 0.0
  %856 = vmatpush1.msra.mxu0 0.0
  %857 = vmatprep.subr.mxu0 0.0
  %858 = vmatpush1.msra.mxu0 0.0
  %859 = vmatprep.subr.mxu0 0.0
  %860 = vmatpush1.msra.mxu0 0.0
  %861 = vmatprep.subr.mxu0 0.0
  %862 = vmatpush1.msra.mxu0 0.0
  %863 = vmatprep.subr.mxu0 0.0
  %864 = vmatpush1.msra.mxu0 0.0
  %865 = vmatprep.subr.mxu0 0.0
  %866 = vmatpush1.msra.mxu0 0.0
  %867 = vmatprep.subr.mxu0 0.0
  %868 = vmatpush1.msra.mxu0 0.0
  %869 = vmatprep.subr.mxu0 0.0
  %870 = vmatpush1.msra.mxu0 0.0
  %871 = vmatprep.subr.mxu0 0.0
  %872 = vmatpush1.msra.mxu0 0.0
  %873 = vmatprep.subr.mxu0 0.0
  %874 = vmatpush1.msra.mxu0 0.0
  %875 = vmatprep.subr.mxu0 0.0
  %876 = vmatpush1.msra.mxu0 0.0
  %877 = vmatprep.subr.mxu0 0.0
  %878 = vmatpush1.msra.mxu0 0.0
  %879 = vmatprep.subr.mxu0 0.0
  %880 = vmatpush1.msra.mxu0 0.0
  %881 = vmatprep.subr.mxu0 0.0
  %882 = vmatpush1.msra.mxu0 0.0
  %883 = vmatprep.mubr.f32.mxu0 0.0
  %884 = vmatmul.mubr.f32.gmra.mrb[0].mxu0 %v206
  %v885 = vpop.f32.mrb[0].mxu0
  %v886 = vadd.f32 %v818, %v885
  %v887 = vpop.f32.mrb[0].mxu0
  %888 = vdwg.mxu0
  %889 = vst.msk [vmem:[#allocation2 + $0x7] sm:$0x1] %vm278, %v886
  %890 = vst.msk [vmem:[#allocation2 + $0xe] sm:$0x2] %vm280, %v886
  %v891 = vlaneseq
  %v892 = vshrl.u32 %v891, 7
  %v893 = vlaneseq
  %v894 = vand.u32 %v893, 127
  %vm895 = vcmp.eq.s32.totalorder %v892, %v894
  %v896 = vsel %vm895, 1, 0
  %v897 = vcvt.s32.f32 %v896
  %v898 = vsub.f32 1.0, %v897
  %v899 = vld [vmem:[#allocation2] sm:$0xff]
  %vm900 = vcmask 80896
  %v902 = vsel %vm900, %v899, 0
  %904 = vmatprep.subr.mxu0 0.0
  %905 = vmatpush1.xpose.msra.mxu0 %v902
  %906 = vmatprep.subr.mxu0 0.0
  %907 = vmatpush1.xpose.msra.mxu0 0.0
  %908 = vmatprep.subr.mxu0 0.0
  %909 = vmatpush1.xpose.msra.mxu0 0.0
  %910 = vmatprep.subr.mxu0 0.0
  %911 = vmatpush1.xpose.msra.mxu0 0.0
  %912 = vmatprep.subr.mxu0 0.0
  %913 = vmatpush1.xpose.msra.mxu0 0.0
  %914 = vmatprep.subr.mxu0 0.0
  %915 = vmatpush1.xpose.msra.mxu0 0.0
  %916 = vmatprep.subr.mxu0 0.0
  %917 = vmatpush1.xpose.msra.mxu0 0.0
  %918 = vmatprep.subr.mxu0 0.0
  %919 = vmatpush1.xpose.msra.mxu0 0.0
  %920 = vmatprep.subr.mxu0 0.0
  %921 = vmatpush1.xpose.msra.mxu0 0.0
  %922 = vmatprep.subr.mxu0 0.0
  %923 = vmatpush1.xpose.msra.mxu0 0.0
  %924 = vmatprep.subr.mxu0 0.0
  %925 = vmatpush1.xpose.msra.mxu0 0.0
  %926 = vmatprep.subr.mxu0 0.0
  %927 = vmatpush1.xpose.msra.mxu0 0.0
  %928 = vmatprep.subr.mxu0 0.0
  %929 = vmatpush1.xpose.msra.mxu0 0.0
  %930 = vmatprep.subr.mxu0 0.0
  %931 = vmatpush1.xpose.msra.mxu0 0.0
  %932 = vmatprep.subr.mxu0 0.0
  %933 = vmatpush1.xpose.msra.mxu0 0.0
  %934 = vmatprep.subr.mxu0 0.0
  %935 = vmatpush1.xpose.msra.mxu0 0.0
  %936 = vmatprep.subr.mxu0 0.0
  %937 = vmatpush1.xpose.msra.mxu0 0.0
  %938 = vmatprep.subr.mxu0 0.0
  %939 = vmatpush1.xpose.msra.mxu0 0.0
  %940 = vmatprep.subr.mxu0 0.0
  %941 = vmatpush1.xpose.msra.mxu0 0.0
  %942 = vmatprep.subr.mxu0 0.0
  %943 = vmatpush1.xpose.msra.mxu0 0.0
  %944 = vmatprep.subr.mxu0 0.0
  %945 = vmatpush1.xpose.msra.mxu0 0.0
  %946 = vmatprep.subr.mxu0 0.0
  %947 = vmatpush1.xpose.msra.mxu0 0.0
  %948 = vmatprep.subr.mxu0 0.0
  %949 = vmatpush1.xpose.msra.mxu0 0.0
  %950 = vmatprep.subr.mxu0 0.0
  %951 = vmatpush1.xpose.msra.mxu0 0.0
  %952 = vmatprep.subr.mxu0 0.0
  %953 = vmatpush1.xpose.msra.mxu0 0.0
  %954 = vmatprep.subr.mxu0 0.0
  %955 = vmatpush1.xpose.msra.mxu0 0.0
  %956 = vmatprep.subr.mxu0 0.0
  %957 = vmatpush1.xpose.msra.mxu0 0.0
  %958 = vmatprep.subr.mxu0 0.0
  %959 = vmatpush1.xpose.msra.mxu0 0.0
  %960 = vmatprep.subr.mxu0 0.0
  %961 = vmatpush1.xpose.msra.mxu0 0.0
  %962 = vmatprep.subr.mxu0 0.0
  %963 = vmatpush1.xpose.msra.mxu0 0.0
  %964 = vmatprep.subr.mxu0 0.0
  %965 = vmatpush1.xpose.msra.mxu0 0.0
  %966 = vmatprep.subr.mxu0 0.0
  %967 = vmatpush1.xpose.msra.mxu0 0.0
  %968 = vmatprep.mubr.f32.mxu0 0.0
  %969 = vmatmul.mubr.f32.gmra.mrb[0].mxu0 %v902
  %v970 = vpop.f32.mrb[0].mxu0
  %v971 = vadd.f32 0.0, %v970
  %v972 = vpop.f32.mrb[0].mxu0
  %973 = vdwg.mxu0
  %v974 = vmul.f32 %v971, 0.5
  %v975 = vtanh.pop %v974
  %v976 = vmul.f32 %v975, 0.5
  %v977 = vadd.f32 %v976, 0.5
  %v978 = vmul.f32 %v977, %v898
  %v979 = vadd.f32 %v978, %v897
  %vm980 = vcmask 64512
  %981 = vst.msk [vmem:[%s3] sm:$0xff] %vm980, %v979
  %v982 = vld [vmem:[#allocation2 + $0x8] sm:$0xff]
  %v984 = vsel %vm900, %v982, 0
  %986 = vmatprep.subr.mxu0 0.0
  %987 = vmatpush1.xpose.msra.mxu0 %v984
  %988 = vmatprep.subr.mxu0 0.0
  %989 = vmatpush1.xpose.msra.mxu0 0.0
  %990 = vmatprep.subr.mxu0 0.0
  %991 = vmatpush1.xpose.msra.mxu0 0.0
  %992 = vmatprep.subr.mxu0 0.0
  %993 = vmatpush1.xpose.msra.mxu0 0.0
  %994 = vmatprep.subr.mxu0 0.0
  %995 = vmatpush1.xpose.msra.mxu0 0.0
  %996 = vmatprep.subr.mxu0 0.0
  %997 = vmatpush1.xpose.msra.mxu0 0.0
  %998 = vmatprep.subr.mxu0 0.0
  %999 = vmatpush1.xpose.msra.mxu0 0.0
  %1000 = vmatprep.subr.mxu0 0.0
  %1001 = vmatpush1.xpose.msra.mxu0 0.0
  %1002 = vmatprep.subr.mxu0 0.0
  %1003 = vmatpush1.xpose.msra.mxu0 0.0
  %1004 = vmatprep.subr.mxu0 0.0
  %1005 = vmatpush1.xpose.msra.mxu0 0.0
  %1006 = vmatprep.subr.mxu0 0.0
  %1007 = vmatpush1.xpose.msra.mxu0 0.0
  %1008 = vmatprep.subr.mxu0 0.0
  %1009 = vmatpush1.xpose.msra.mxu0 0.0
  %1010 = vmatprep.subr.mxu0 0.0
  %1011 = vmatpush1.xpose.msra.mxu0 0.0
  %1012 = vmatprep.subr.mxu0 0.0
  %1013 = vmatpush1.xpose.msra.mxu0 0.0
  %1014 = vmatprep.subr.mxu0 0.0
  %1015 = vmatpush1.xpose.msra.mxu0 0.0
  %1016 = vmatprep.subr.mxu0 0.0
  %1017 = vmatpush1.xpose.msra.mxu0 0.0
  %1018 = vmatprep.subr.mxu0 0.0
  %1019 = vmatpush1.xpose.msra.mxu0 0.0
  %1020 = vmatprep.subr.mxu0 0.0
  %1021 = vmatpush1.xpose.msra.mxu0 0.0
  %1022 = vmatprep.subr.mxu0 0.0
  %1023 = vmatpush1.xpose.msra.mxu0 0.0
  %1024 = vmatprep.subr.mxu0 0.0
  %1025 = vmatpush1.xpose.msra.mxu0 0.0
  %1026 = vmatprep.subr.mxu0 0.0
  %1027 = vmatpush1.xpose.msra.mxu0 0.0
  %1028 = vmatprep.subr.mxu0 0.0
  %1029 = vmatpush1.xpose.msra.mxu0 0.0
  %1030 = vmatprep.subr.mxu0 0.0
  %1031 = vmatpush1.xpose.msra.mxu0 0.0
  %1032 = vmatprep.subr.mxu0 0.0
  %1033 = vmatpush1.xpose.msra.mxu0 0.0
  %1034 = vmatprep.subr.mxu0 0.0
  %1035 = vmatpush1.xpose.msra.mxu0 0.0
  %1036 = vmatprep.subr.mxu0 0.0
  %1037 = vmatpush1.xpose.msra.mxu0 0.0
  %1038 = vmatprep.subr.mxu0 0.0
  %1039 = vmatpush1.xpose.msra.mxu0 0.0
  %1040 = vmatprep.subr.mxu0 0.0
  %1041 = vmatpush1.xpose.msra.mxu0 0.0
  %1042 = vmatprep.subr.mxu0 0.0
  %1043 = vmatpush1.xpose.msra.mxu0 0.0
  %1044 = vmatprep.subr.mxu0 0.0
  %1045 = vmatpush1.xpose.msra.mxu0 0.0
  %1046 = vmatprep.subr.mxu0 0.0
  %1047 = vmatpush1.xpose.msra.mxu0 0.0
  %1048 = vmatprep.subr.mxu0 0.0
  %1049 = vmatpush1.xpose.msra.mxu0 0.0
  %1050 = vmatprep.mubr.f32.mxu0 0.0
  %1051 = vmatmul.mubr.f32.gmra.mrb[0].mxu0 %v984
  %v1052 = vpop.f32.mrb[0].mxu0
  %v1053 = vadd.f32 0.0, %v1052
  %v1054 = vpop.f32.mrb[0].mxu0
  %1055 = vdwg.mxu0
  %v1056 = vmul.f32 %v1053, 0.5
  %v1057 = vtanh.pop %v1056
  %v1058 = vmul.f32 %v1057, 0.5
  %v1059 = vadd.f32 %v1058, 0.5
  %v1060 = vmul.f32 %v1059, %v898
  %v1061 = vadd.f32 %v1060, %v897
  %1062 = vst.msk [vmem:[%s3 + $0x8] sm:$0xff] %vm980, %v1061
  // Predicated region
  $region14: #{tpu_custom_call.1} parent=0 // pred_check
    _
  $region15: #{tpu_custom_call.1} parent=0 // pred_check_branch
    %1064 = sbr.rel (0) target = $region17
  $region16: #{tpu_custom_call.1} parent=0 // pred_region
    _
  $region17: #{tpu_custom_call.1} parent=0 // pred_fallthru
    _
  // Predicated region
  $region18: #{tpu_custom_call.1} parent=0 // pred_check
    _
  $region19: #{tpu_custom_call.1} parent=0 // pred_check_branch
    %1066 = sbr.rel (0) target = $region21
  $region20: #{tpu_custom_call.1} parent=0 // pred_region
    _
  $region21: #{tpu_custom_call.1} parent=0 // pred_fallthru
    _

</llo_original>
